<compile_context>
chip_gen: v5e
topology: v5e:2x2
jax: 0.10.0
libtpu: 0.0.40
codegen_flags: <defaults>
</compile_context>

<pallas_src>
import functools

import jax
import jax.numpy as jnp
from jax.experimental import pallas as pl
from jax.experimental.pallas import tpu as pltpu

SEQ_STEPS = 2
N_INPUTS = 3
N_NEURONS = 5

LANE = 128        # TPU lane width (last-dim vreg extent)
TILE_B_MAX = 512  # >=512 lanes amortizes the ~0.35us/step pipeline overhead;
                  # per-lane VMEM ~ (SEQ*I + SEQ*H + H)*4 ~ 84 B (x2 double-
                  # buffered ~168 B) -> comfortably under v7x's 32 MiB scoped VMEM.


def _round_up(n, m):
    return ((n + m - 1) // m) * m


def rnn_cell_kernel(x_ref, h0_ref, wih_ref, whh_ref, b_ref, out_ref):
    """One batch tile; batch lives on the lane (last) axis everywhere.

    x_ref  : (SEQ, I, TB)   inputs, time-major, features on sublanes
    h0_ref : (H, TB)        initial hidden state
    wih_ref: (H, I)         input->hidden weight (PyTorch layout)
    whh_ref: (H, H)         hidden->hidden weight (PyTorch layout)
    b_ref  : (H, 1)         combined bias b_ih + b_hh
    out_ref: (SEQ, H, TB)   per-step hidden states
    """
    tb = h0_ref.shape[1]

    # Hoist every loop-invariant broadcast out of the unrolled time loop
    # (JAX does not CSE broadcast_in_dim): bias and all weight columns.
    bias = jnp.broadcast_to(b_ref[...], (N_NEURONS, tb))
    wih_cols = [jnp.broadcast_to(wih_ref[:, k:k + 1], (N_NEURONS, tb))
                for k in range(N_INPUTS)]
    whh_cols = [jnp.broadcast_to(whh_ref[:, k:k + 1], (N_NEURONS, tb))
                for k in range(N_NEURONS)]

    h = h0_ref[...]                                          # (H, TB)
    for i in range(SEQ_STEPS):
        x_i = x_ref[i]                                       # (I, TB)
        # Tiny contractions on the VPU: K-unrolled FMAs (no MXU push/drain).
        acc = bias
        for k in range(N_INPUTS):
            acc = acc + wih_cols[k] * x_i[k:k + 1, :]        # (H,TB)*(1,TB)
        for k in range(N_NEURONS):
            acc = acc + whh_cols[k] * h[k:k + 1, :]
        h = jnp.tanh(acc)                                    # EUP slot
        out_ref[i] = h                                       # lane-dense store


def _rnn_lanes(x_t, h0_t, w_ih, w_hh, bias, *, tile_b):
    """Batch-last, lane-padded entry point: no layout plumbing, pipelined grid."""
    padded_b = x_t.shape[-1]
    grid = (padded_b // tile_b,)
    return pl.pallas_call(
        rnn_cell_kernel,
        grid=grid,
        in_specs=[
            pl.BlockSpec((SEQ_STEPS, N_INPUTS, tile_b), lambda j: (0, 0, j)),
            pl.BlockSpec((N_NEURONS, tile_b), lambda j: (0, j)),
            pl.BlockSpec((N_NEURONS, N_INPUTS), lambda j: (0, 0)),
            pl.BlockSpec((N_NEURONS, N_NEURONS), lambda j: (0, 0)),
            pl.BlockSpec((N_NEURONS, 1), lambda j: (0, 0)),
        ],
        out_specs=pl.BlockSpec((SEQ_STEPS, N_NEURONS, tile_b),
                               lambda j: (0, 0, j)),
        out_shape=jax.ShapeDtypeStruct((SEQ_STEPS, N_NEURONS, padded_b),
                                       jnp.float32),
        compiler_params=pltpu.CompilerParams(
            # Batch tiles are independent -> shard across both TCs on v7x.
            dimension_semantics=("parallel",)),
    )(x_t, h0_t, w_ih, w_hh, bias)


@jax.jit
def clean_basic_rnn_forward(X, hx, w_ih, w_hh, b_ih, b_hh):
    """PyTorch-layout wrapper.  X: (2, B, 3) f32, hx: (B, 5) f32.

    Layout plumbing (transpose + lane padding + slice) lives here, fused under
    one jit with the pallas_call.  Keep the surrounding graph batch-last in a
    real pipeline and call _rnn_lanes directly to avoid the transposes.
    """
    B = X.shape[1]
    tile_b = min(TILE_B_MAX, _round_up(B, LANE))
    padded_b = _round_up(B, tile_b)

    x_t = jnp.transpose(X, (0, 2, 1))                        # (SEQ, I, B)
    h0_t = hx.T                                              # (H, B)
    pad = padded_b - B
    if pad:
        x_t = jnp.pad(x_t, ((0, 0), (0, 0), (0, pad)))
        h0_t = jnp.pad(h0_t, ((0, 0), (0, pad)))
    bias = (b_ih + b_hh).reshape(N_NEURONS, 1)               # (H, 1)

    out_t = _rnn_lanes(x_t, h0_t, w_ih, w_hh, bias, tile_b=tile_b)

    out_seq = jnp.transpose(out_t[:, :, :B], (0, 2, 1))      # (SEQ, B, H)
    h_final = out_seq[SEQ_STEPS - 1]                         # reuse, no extra output slab
    return [out_seq[0], out_seq[1]], h_final


if __name__ == "__main__":
    batch_size = 4

    key = jax.random.PRNGKey(0)
    k_x, k_h, k_wih, k_whh, k_bih, k_bhh, k_x2, k_h2 = jax.random.split(key, 8)

    # Deterministic params (PyTorch RNNCell default init: U(-1/sqrt(H), 1/sqrt(H)))
    bound = 1.0 / jnp.sqrt(jnp.float32(N_NEURONS))
    w_ih = jax.random.uniform(k_wih, (N_NEURONS, N_INPUTS), jnp.float32, -bound, bound)
    w_hh = jax.random.uniform(k_whh, (N_NEURONS, N_NEURONS), jnp.float32, -bound, bound)
    b_ih = jax.random.uniform(k_bih, (N_NEURONS,), jnp.float32, -bound, bound)
    b_hh = jax.random.uniform(k_bhh, (N_NEURONS,), jnp.float32, -bound, bound)

    def ref_forward(X, hx):
        outs = []
        h = hx
        for i in range(SEQ_STEPS):
            h = jnp.tanh(X[i] @ w_ih.T + b_ih + h @ w_hh.T + b_hh)
            outs.append(h)
        return outs, h

    def check(X, hx):
        outputs, h_final = clean_basic_rnn_forward(X, hx, w_ih, w_hh, b_ih, b_hh)
        jax.block_until_ready(h_final)
        ref_outs, ref_h = ref_forward(X, hx)
        assert jnp.allclose(h_final, ref_h, atol=1e-5, rtol=1e-5)
        assert jnp.allclose(outputs[0], ref_outs[0], atol=1e-5, rtol=1e-5)
        assert jnp.allclose(outputs[1], ref_outs[1], atol=1e-5, rtol=1e-5)

    # Module-sized test: batch=4 -> padded to one 128-lane tile, grid=(1,).
    X = jax.random.normal(k_x, (SEQ_STEPS, batch_size, N_INPUTS), jnp.float32)
    hx = jax.random.normal(k_h, (batch_size, N_NEURONS), jnp.float32)
    check(X, hx)

    # Larger batch exercising the pipelined/parallel batch grid:
    # B=1200 -> padded 1536 -> grid=(3,) of 512-lane tiles.
    X2 = jax.random.normal(k_x2, (SEQ_STEPS, 1200, N_INPUTS), jnp.float32)
    hx2 = jax.random.normal(k_h2, (1200, N_NEURONS), jnp.float32)
    check(X2, hx2)

    print("KERNEL_OK")
</pallas_src>

<mosaic_0001>
module attributes {stable_mosaic.version = 11 : i64} {
  func.func @rnn_cell_kernel(%arg0: i32, %arg1: memref<2x3x128xf32, #tpu.memory_space<vmem>>, %arg2: memref<5x128xf32, #tpu.memory_space<vmem>>, %arg3: memref<5x3xf32, #tpu.memory_space<vmem>>, %arg4: memref<5x5xf32, #tpu.memory_space<vmem>>, %arg5: memref<5x1xf32, #tpu.memory_space<vmem>>, %arg6: memref<2x5x128xf32, #tpu.memory_space<vmem>>) attributes {dimension_semantics = [#tpu.dimension_semantics<parallel>], iteration_bounds = array<i64: 1>, scalar_prefetch = 0 : i64, scratch_operands = 0 : i64, tpu.core_type = #tpu.core_type<tc>, window_params = [{transform_indices = @transform_0, window_bounds = array<i64: 2, 3, 128>}, {transform_indices = @transform_1, window_bounds = array<i64: 5, 128>}, {pipeline_mode = #tpu.pipeline_mode<synchronous>, transform_indices = @transform_2, window_bounds = array<i64: 5, 3>}, {pipeline_mode = #tpu.pipeline_mode<synchronous>, transform_indices = @transform_3, window_bounds = array<i64: 5, 5>}, {pipeline_mode = #tpu.pipeline_mode<synchronous>, transform_indices = @transform_4, window_bounds = array<i64: 5, 1>}, {transform_indices = @transform_5, window_bounds = array<i64: 2, 5, 128>}]} {
    %c0 = arith.constant 0 : index
    %c0_0 = arith.constant 0 : index
    %0 = vector.load %arg5[%c0, %c0_0] : memref<5x1xf32, #tpu.memory_space<vmem>>, vector<5x1xf32>
    %1 = vector.shape_cast %0 : vector<5x1xf32> to vector<5x1xf32>
    %2 = vector.broadcast %1 : vector<5x1xf32> to vector<5x128xf32>
    %c0_1 = arith.constant 0 : index
    %c0_2 = arith.constant 0 : index
    %3 = vector.load %arg3[%c0_1, %c0_2] : memref<5x3xf32, #tpu.memory_space<vmem>>, vector<5x1xf32>
    %4 = vector.shape_cast %3 : vector<5x1xf32> to vector<5x1xf32>
    %5 = vector.broadcast %4 : vector<5x1xf32> to vector<5x128xf32>
    %c0_3 = arith.constant 0 : index
    %c1 = arith.constant 1 : index
    %6 = vector.load %arg3[%c0_3, %c1] : memref<5x3xf32, #tpu.memory_space<vmem>>, vector<5x1xf32>
    %7 = vector.shape_cast %6 : vector<5x1xf32> to vector<5x1xf32>
    %8 = vector.broadcast %7 : vector<5x1xf32> to vector<5x128xf32>
    %c0_4 = arith.constant 0 : index
    %c2 = arith.constant 2 : index
    %9 = vector.load %arg3[%c0_4, %c2] : memref<5x3xf32, #tpu.memory_space<vmem>>, vector<5x1xf32>
    %10 = vector.shape_cast %9 : vector<5x1xf32> to vector<5x1xf32>
    %11 = vector.broadcast %10 : vector<5x1xf32> to vector<5x128xf32>
    %c0_5 = arith.constant 0 : index
    %c0_6 = arith.constant 0 : index
    %12 = vector.load %arg4[%c0_5, %c0_6] : memref<5x5xf32, #tpu.memory_space<vmem>>, vector<5x1xf32>
    %13 = vector.shape_cast %12 : vector<5x1xf32> to vector<5x1xf32>
    %14 = vector.broadcast %13 : vector<5x1xf32> to vector<5x128xf32>
    %c0_7 = arith.constant 0 : index
    %c1_8 = arith.constant 1 : index
    %15 = vector.load %arg4[%c0_7, %c1_8] : memref<5x5xf32, #tpu.memory_space<vmem>>, vector<5x1xf32>
    %16 = vector.shape_cast %15 : vector<5x1xf32> to vector<5x1xf32>
    %17 = vector.broadcast %16 : vector<5x1xf32> to vector<5x128xf32>
    %c0_9 = arith.constant 0 : index
    %c2_10 = arith.constant 2 : index
    %18 = vector.load %arg4[%c0_9, %c2_10] : memref<5x5xf32, #tpu.memory_space<vmem>>, vector<5x1xf32>
    %19 = vector.shape_cast %18 : vector<5x1xf32> to vector<5x1xf32>
    %20 = vector.broadcast %19 : vector<5x1xf32> to vector<5x128xf32>
    %c0_11 = arith.constant 0 : index
    %c3 = arith.constant 3 : index
    %21 = vector.load %arg4[%c0_11, %c3] : memref<5x5xf32, #tpu.memory_space<vmem>>, vector<5x1xf32>
    %22 = vector.shape_cast %21 : vector<5x1xf32> to vector<5x1xf32>
    %23 = vector.broadcast %22 : vector<5x1xf32> to vector<5x128xf32>
    %c0_12 = arith.constant 0 : index
    %c4 = arith.constant 4 : index
    %24 = vector.load %arg4[%c0_12, %c4] : memref<5x5xf32, #tpu.memory_space<vmem>>, vector<5x1xf32>
    %25 = vector.shape_cast %24 : vector<5x1xf32> to vector<5x1xf32>
    %26 = vector.broadcast %25 : vector<5x1xf32> to vector<5x128xf32>
    %c0_13 = arith.constant 0 : index
    %c0_14 = arith.constant 0 : index
    %27 = vector.load %arg2[%c0_13, %c0_14] : memref<5x128xf32, #tpu.memory_space<vmem>>, vector<5x128xf32>
    %c0_15 = arith.constant 0 : index
    %c0_16 = arith.constant 0 : index
    %c0_17 = arith.constant 0 : index
    %28 = vector.load %arg1[%c0_15, %c0_16, %c0_17] : memref<2x3x128xf32, #tpu.memory_space<vmem>>, vector<1x3x128xf32>
    %29 = vector.shape_cast %28 : vector<1x3x128xf32> to vector<3x128xf32>
    %30 = vector.extract_strided_slice %29 {offsets = [0, 0], sizes = [1, 128], strides = [1, 1]} : vector<3x128xf32> to vector<1x128xf32>
    %31 = vector.broadcast %30 : vector<1x128xf32> to vector<5x128xf32>
    %32 = arith.mulf %5, %31 : vector<5x128xf32>
    %33 = arith.addf %2, %32 : vector<5x128xf32>
    %34 = vector.extract_strided_slice %29 {offsets = [1, 0], sizes = [1, 128], strides = [1, 1]} : vector<3x128xf32> to vector<1x128xf32>
    %35 = vector.broadcast %34 : vector<1x128xf32> to vector<5x128xf32>
    %36 = arith.mulf %8, %35 : vector<5x128xf32>
    %37 = arith.addf %33, %36 : vector<5x128xf32>
    %38 = vector.extract_strided_slice %29 {offsets = [2, 0], sizes = [1, 128], strides = [1, 1]} : vector<3x128xf32> to vector<1x128xf32>
    %39 = vector.broadcast %38 : vector<1x128xf32> to vector<5x128xf32>
    %40 = arith.mulf %11, %39 : vector<5x128xf32>
    %41 = arith.addf %37, %40 : vector<5x128xf32>
    %42 = vector.extract_strided_slice %27 {offsets = [0, 0], sizes = [1, 128], strides = [1, 1]} : vector<5x128xf32> to vector<1x128xf32>
    %43 = vector.broadcast %42 : vector<1x128xf32> to vector<5x128xf32>
    %44 = arith.mulf %14, %43 : vector<5x128xf32>
    %45 = arith.addf %41, %44 : vector<5x128xf32>
    %46 = vector.extract_strided_slice %27 {offsets = [1, 0], sizes = [1, 128], strides = [1, 1]} : vector<5x128xf32> to vector<1x128xf32>
    %47 = vector.broadcast %46 : vector<1x128xf32> to vector<5x128xf32>
    %48 = arith.mulf %17, %47 : vector<5x128xf32>
    %49 = arith.addf %45, %48 : vector<5x128xf32>
    %50 = vector.extract_strided_slice %27 {offsets = [2, 0], sizes = [1, 128], strides = [1, 1]} : vector<5x128xf32> to vector<1x128xf32>
    %51 = vector.broadcast %50 : vector<1x128xf32> to vector<5x128xf32>
    %52 = arith.mulf %20, %51 : vector<5x128xf32>
    %53 = arith.addf %49, %52 : vector<5x128xf32>
    %54 = vector.extract_strided_slice %27 {offsets = [3, 0], sizes = [1, 128], strides = [1, 1]} : vector<5x128xf32> to vector<1x128xf32>
    %55 = vector.broadcast %54 : vector<1x128xf32> to vector<5x128xf32>
    %56 = arith.mulf %23, %55 : vector<5x128xf32>
    %57 = arith.addf %53, %56 : vector<5x128xf32>
    %58 = vector.extract_strided_slice %27 {offsets = [4, 0], sizes = [1, 128], strides = [1, 1]} : vector<5x128xf32> to vector<1x128xf32>
    %59 = vector.broadcast %58 : vector<1x128xf32> to vector<5x128xf32>
    %60 = arith.mulf %26, %59 : vector<5x128xf32>
    %61 = arith.addf %57, %60 : vector<5x128xf32>
    %62 = math.tanh %61 : vector<5x128xf32>
    %c0_18 = arith.constant 0 : index
    %c0_19 = arith.constant 0 : index
    %c0_20 = arith.constant 0 : index
    %63 = vector.load %arg6[%c0_18, %c0_19, %c0_20] : memref<2x5x128xf32, #tpu.memory_space<vmem>>, vector<1x5x128xf32>
    %64 = vector.shape_cast %63 : vector<1x5x128xf32> to vector<5x128xf32>
    %65 = vector.shape_cast %62 : vector<5x128xf32> to vector<1x5x128xf32>
    tpu.vector_store %arg6[%c0_18, %c0_19, %c0_20], %65 {strides = array<i32>} : memref<2x5x128xf32, #tpu.memory_space<vmem>>, vector<1x5x128xf32>,
    %c1_21 = arith.constant 1 : index
    %c0_22 = arith.constant 0 : index
    %c0_23 = arith.constant 0 : index
    %66 = vector.load %arg1[%c1_21, %c0_22, %c0_23] : memref<2x3x128xf32, #tpu.memory_space<vmem>>, vector<1x3x128xf32>
    %67 = vector.shape_cast %66 : vector<1x3x128xf32> to vector<3x128xf32>
    %68 = vector.extract_strided_slice %67 {offsets = [0, 0], sizes = [1, 128], strides = [1, 1]} : vector<3x128xf32> to vector<1x128xf32>
    %69 = vector.broadcast %68 : vector<1x128xf32> to vector<5x128xf32>
    %70 = arith.mulf %5, %69 : vector<5x128xf32>
    %71 = arith.addf %2, %70 : vector<5x128xf32>
    %72 = vector.extract_strided_slice %67 {offsets = [1, 0], sizes = [1, 128], strides = [1, 1]} : vector<3x128xf32> to vector<1x128xf32>
    %73 = vector.broadcast %72 : vector<1x128xf32> to vector<5x128xf32>
    %74 = arith.mulf %8, %73 : vector<5x128xf32>
    %75 = arith.addf %71, %74 : vector<5x128xf32>
    %76 = vector.extract_strided_slice %67 {offsets = [2, 0], sizes = [1, 128], strides = [1, 1]} : vector<3x128xf32> to vector<1x128xf32>
    %77 = vector.broadcast %76 : vector<1x128xf32> to vector<5x128xf32>
    %78 = arith.mulf %11, %77 : vector<5x128xf32>
    %79 = arith.addf %75, %78 : vector<5x128xf32>
    %80 = vector.extract_strided_slice %62 {offsets = [0, 0], sizes = [1, 128], strides = [1, 1]} : vector<5x128xf32> to vector<1x128xf32>
    %81 = vector.broadcast %80 : vector<1x128xf32> to vector<5x128xf32>
    %82 = arith.mulf %14, %81 : vector<5x128xf32>
    %83 = arith.addf %79, %82 : vector<5x128xf32>
    %84 = vector.extract_strided_slice %62 {offsets = [1, 0], sizes = [1, 128], strides = [1, 1]} : vector<5x128xf32> to vector<1x128xf32>
    %85 = vector.broadcast %84 : vector<1x128xf32> to vector<5x128xf32>
    %86 = arith.mulf %17, %85 : vector<5x128xf32>
    %87 = arith.addf %83, %86 : vector<5x128xf32>
    %88 = vector.extract_strided_slice %62 {offsets = [2, 0], sizes = [1, 128], strides = [1, 1]} : vector<5x128xf32> to vector<1x128xf32>
    %89 = vector.broadcast %88 : vector<1x128xf32> to vector<5x128xf32>
    %90 = arith.mulf %20, %89 : vector<5x128xf32>
    %91 = arith.addf %87, %90 : vector<5x128xf32>
    %92 = vector.extract_strided_slice %62 {offsets = [3, 0], sizes = [1, 128], strides = [1, 1]} : vector<5x128xf32> to vector<1x128xf32>
    %93 = vector.broadcast %92 : vector<1x128xf32> to vector<5x128xf32>
    %94 = arith.mulf %23, %93 : vector<5x128xf32>
    %95 = arith.addf %91, %94 : vector<5x128xf32>
    %96 = vector.extract_strided_slice %62 {offsets = [4, 0], sizes = [1, 128], strides = [1, 1]} : vector<5x128xf32> to vector<1x128xf32>
    %97 = vector.broadcast %96 : vector<1x128xf32> to vector<5x128xf32>
    %98 = arith.mulf %26, %97 : vector<5x128xf32>
    %99 = arith.addf %95, %98 : vector<5x128xf32>
    %100 = math.tanh %99 : vector<5x128xf32>
    %c1_24 = arith.constant 1 : index
    %c0_25 = arith.constant 0 : index
    %c0_26 = arith.constant 0 : index
    %101 = vector.load %arg6[%c1_24, %c0_25, %c0_26] : memref<2x5x128xf32, #tpu.memory_space<vmem>>, vector<1x5x128xf32>
    %102 = vector.shape_cast %101 : vector<1x5x128xf32> to vector<5x128xf32>
    %103 = vector.shape_cast %100 : vector<5x128xf32> to vector<1x5x128xf32>
    tpu.vector_store %arg6[%c1_24, %c0_25, %c0_26], %103 {strides = array<i32>} : memref<2x5x128xf32, #tpu.memory_space<vmem>>, vector<1x5x128xf32>,
    return
  }
  func.func @transform_0(%arg0: i32) -> (i32, i32, i32) {
    %c0_i32 = arith.constant 0 : i32
    %c0_i32_0 = arith.constant 0 : i32
    %c0_i32_1 = arith.constant 0 : i32
    return %c0_i32, %c0_i32_0, %arg0 : i32, i32, i32
  }
  func.func @transform_1(%arg0: i32) -> (i32, i32) {
    %c0_i32 = arith.constant 0 : i32
    %c0_i32_0 = arith.constant 0 : i32
    return %c0_i32, %arg0 : i32, i32
  }
  func.func @transform_2(%arg0: i32) -> (i32, i32) {
    %c0_i32 = arith.constant 0 : i32
    %c0_i32_0 = arith.constant 0 : i32
    %c0_i32_1 = arith.constant 0 : i32
    return %c0_i32, %c0_i32_0 : i32, i32
  }
  func.func @transform_3(%arg0: i32) -> (i32, i32) {
    %c0_i32 = arith.constant 0 : i32
    %c0_i32_0 = arith.constant 0 : i32
    %c0_i32_1 = arith.constant 0 : i32
    return %c0_i32, %c0_i32_0 : i32, i32
  }
  func.func @transform_4(%arg0: i32) -> (i32, i32) {
    %c0_i32 = arith.constant 0 : i32
    %c0_i32_0 = arith.constant 0 : i32
    %c0_i32_1 = arith.constant 0 : i32
    return %c0_i32, %c0_i32_0 : i32, i32
  }
  func.func @transform_5(%arg0: i32) -> (i32, i32, i32) {
    %c0_i32 = arith.constant 0 : i32
    %c0_i32_0 = arith.constant 0 : i32
    %c0_i32_1 = arith.constant 0 : i32
    return %c0_i32, %c0_i32_0, %arg0 : i32, i32, i32
  }
}

</mosaic_0001>

<llo_original>
// kernel: clean_basic_rnn_forward.1
$region0: #{clean_basic_rnn_forward.1}
  #allocation0 [shape = 'u32[]', space=smem, size = 0x4, offset = 0x4, fixed_abs, tag = 'smem constant byte address 0x4 - core index']
  #allocation1 [shape = 'u32[72,128]{1,0:T(1,128)}', space=vmem, size = 0x9000, scoped, tag = 'internal scratch']
  %s0 = inlined_call_operand.vmem [shape: f32[2,3,128], index: 0, kind: input, shape index: {}]
  %s1 = inlined_call_operand.vmem [shape: f32[5,128], index: 1, kind: input, shape index: {}]
  %s2 = inlined_call_operand.vmem [shape: f32[5,3], index: 2, kind: input, shape index: {}]
  %s3 = inlined_call_operand.vmem [shape: f32[5,5], index: 3, kind: input, shape index: {}]
  %s4 = inlined_call_operand.vmem [shape: f32[5,1], index: 4, kind: input, shape index: {}]
  %s5 = inlined_call_operand.vmem [shape: f32[2,5,128], index: 5, kind: output, shape index: {}]
  %s6 = sld [smem:[#allocation0]]
  $region30: #{clean_basic_rnn_forward.1} parent=0
    _
  %s8 = ssub.s32 1, %s6
  %s9 = scalar_select 0, %s8, %s6
  // Predicated region
  $region2: #{clean_basic_rnn_forward.1} parent=0 // pred_check
    _
  $region3: #{clean_basic_rnn_forward.1} parent=0 // pred_check_branch
    %11 = sbr.rel (0) target = $region5
  $region4: #{clean_basic_rnn_forward.1} parent=0 // pred_region
    _
  $region5: #{clean_basic_rnn_forward.1} parent=0 // pred_fallthru
    _
  // Predicated region
  $region6: #{clean_basic_rnn_forward.1} parent=0 // pred_check
    _
  $region7: #{clean_basic_rnn_forward.1} parent=0 // pred_check_branch
    %13 = sbr.rel (0) target = $region9
  $region8: #{clean_basic_rnn_forward.1} parent=0 // pred_region
    _
  $region9: #{clean_basic_rnn_forward.1} parent=0 // pred_fallthru
    _
  // Predicated region
  $region10: #{clean_basic_rnn_forward.1} parent=0 // pred_check
    _
  $region11: #{clean_basic_rnn_forward.1} parent=0 // pred_check_branch
    %15 = sbr.rel (0) target = $region13
  $region12: #{clean_basic_rnn_forward.1} parent=0 // pred_region
    _
  $region13: #{clean_basic_rnn_forward.1} parent=0 // pred_fallthru
    _
  // Predicated region
  $region14: #{clean_basic_rnn_forward.1} parent=0 // pred_check
    _
  $region15: #{clean_basic_rnn_forward.1} parent=0 // pred_check_branch
    %17 = sbr.rel (0) target = $region17
  $region16: #{clean_basic_rnn_forward.1} parent=0 // pred_region
    _
  $region17: #{clean_basic_rnn_forward.1} parent=0 // pred_fallthru
    _
  // Predicated region
  $region18: #{clean_basic_rnn_forward.1} parent=0 // pred_check
    _
  $region19: #{clean_basic_rnn_forward.1} parent=0 // pred_check_branch
    %19 = sbr.rel (0) target = $region21
  $region20: #{clean_basic_rnn_forward.1} parent=0 // pred_region
    _
  $region21: #{clean_basic_rnn_forward.1} parent=0 // pred_fallthru
    _
  %v20 = vld [vmem:[%s4] sm:$0x1f]
  %22 = vset.pattern.permute.xlu0 0
  %23 = vperm.xlu0 %22, %v20
  %v24 = vpop.permute.xlu0 %23
  %v26 = vld [vmem:[%s2] sm:$0x1f]
  %28 = vset.pattern.permute.xlu0 0
  %29 = vperm.xlu0 %28, %v26
  %v30 = vpop.permute.xlu0 %29
  %32 = vset.pattern.permute.xlu0 1
  %33 = vperm.xlu0 %32, %v26
  %v34 = vpop.permute.xlu0 %33
  %36 = vset.pattern.permute.xlu0 2
  %37 = vperm.xlu0 %36, %v26
  %v38 = vpop.permute.xlu0 %37
  %v40 = vld [vmem:[%s3] sm:$0x1f]
  %42 = vset.pattern.permute.xlu0 0
  %43 = vperm.xlu0 %42, %v40
  %v44 = vpop.permute.xlu0 %43
  %46 = vset.pattern.permute.xlu0 1
  %47 = vperm.xlu0 %46, %v40
  %v48 = vpop.permute.xlu0 %47
  %50 = vset.pattern.permute.xlu0 2
  %51 = vperm.xlu0 %50, %v40
  %v52 = vpop.permute.xlu0 %51
  %54 = vset.pattern.permute.xlu0 3
  %55 = vperm.xlu0 %54, %v40
  %v56 = vpop.permute.xlu0 %55
  %58 = vset.pattern.permute.xlu0 4
  %59 = vperm.xlu0 %58, %v40
  %v60 = vpop.permute.xlu0 %59
  %v62 = vld [vmem:[%s1] sm:$0x1f]
  %v63 = vld [vmem:[%s0] sm:$0x7]
  %v64 = vperm.slane %v63, 0
  %v65 = vmul.f32 %v30, %v64
  %v66 = vadd.f32 %v24, %v65
  %v67 = vperm.slane %v63, 1
  %v68 = vmul.f32 %v34, %v67
  %v69 = vadd.f32 %v66, %v68
  %v70 = vperm.slane %v63, 2
  %v71 = vmul.f32 %v38, %v70
  %v72 = vadd.f32 %v69, %v71
  %v73 = vperm.slane %v62, 0
  %v74 = vmul.f32 %v44, %v73
  %v75 = vadd.f32 %v72, %v74
  %v76 = vperm.slane %v62, 1
  %v77 = vmul.f32 %v48, %v76
  %v78 = vadd.f32 %v75, %v77
  %v79 = vperm.slane %v62, 2
  %v80 = vmul.f32 %v52, %v79
  %v81 = vadd.f32 %v78, %v80
  %v82 = vperm.slane %v62, 3
  %v83 = vmul.f32 %v56, %v82
  %v84 = vadd.f32 %v81, %v83
  %v85 = vperm.slane %v62, 4
  %v86 = vmul.f32 %v60, %v85
  %v87 = vadd.f32 %v84, %v86
  %v88 = vtanh.pop %v87
  %89 = vst [vmem:[%s5] sm:$0x1f] %v88
  %s90 = scalar_lea.vmem %s0, 4
  %v91 = vld [vmem:[%s90] sm:$0x7]
  %v92 = vperm.slane %v91, 0
  %v93 = vmul.f32 %v30, %v92
  %v94 = vadd.f32 %v24, %v93
  %v95 = vperm.slane %v91, 1
  %v96 = vmul.f32 %v34, %v95
  %v97 = vadd.f32 %v94, %v96
  %v98 = vperm.slane %v91, 2
  %v99 = vmul.f32 %v38, %v98
  %v100 = vadd.f32 %v97, %v99
  %v101 = vperm.slane %v88, 0
  %v102 = vmul.f32 %v44, %v101
  %v103 = vadd.f32 %v100, %v102
  %v104 = vperm.slane %v88, 1
  %v105 = vmul.f32 %v48, %v104
  %v106 = vadd.f32 %v103, %v105
  %v107 = vperm.slane %v88, 2
  %v108 = vmul.f32 %v52, %v107
  %v109 = vadd.f32 %v106, %v108
  %v110 = vperm.slane %v88, 3
  %v111 = vmul.f32 %v56, %v110
  %v112 = vadd.f32 %v109, %v111
  %v113 = vperm.slane %v88, 4
  %v114 = vmul.f32 %v60, %v113
  %v115 = vadd.f32 %v112, %v114
  %v116 = vtanh.pop %v115
  %s117 = scalar_lea.vmem %s5, 8
  %118 = vst [vmem:[%s117] sm:$0x1f] %v116
  // Predicated region
  $region22: #{clean_basic_rnn_forward.1} parent=0 // pred_check
    _
  $region23: #{clean_basic_rnn_forward.1} parent=0 // pred_check_branch
    %120 = sbr.rel (0) target = $region25
  $region24: #{clean_basic_rnn_forward.1} parent=0 // pred_region
    _
  $region25: #{clean_basic_rnn_forward.1} parent=0 // pred_fallthru
    _
  // Predicated region
  $region26: #{clean_basic_rnn_forward.1} parent=0 // pred_check
    _
  $region27: #{clean_basic_rnn_forward.1} parent=0 // pred_check_branch
    %122 = sbr.rel (0) target = $region29
  $region28: #{clean_basic_rnn_forward.1} parent=0 // pred_region
    _
  $region29: #{clean_basic_rnn_forward.1} parent=0 // pred_fallthru
    _

</llo_original>
